<compile_context>
chip_gen: v5e
topology: v5e:2x2
jax: 0.10.0
libtpu: 0.0.40
codegen_flags: <defaults>
</compile_context>

<pallas_src>
import functools

import jax
import jax.numpy as jnp
from jax.experimental import pallas as pl
from jax.experimental.pallas import tpu as pltpu


# ----------------------------------------------------------------------------
# Tile sizing helpers
# ----------------------------------------------------------------------------

def _sublane_multiple(*dtypes) -> int:
    # 8 rows for 4-byte dtypes, 16 for 2-byte, 32 for 1-byte.
    mult = 8
    for dt in dtypes:
        itemsize = jnp.dtype(dt).itemsize
        mult = max(mult, 32 // max(itemsize, 1))
    return mult


def _vmem_capacity_bytes() -> int:
    try:
        info = pltpu.get_tpu_info()
        cap = getattr(info, "vmem_capacity_bytes", None)
        if cap:
            return int(cap)
    except Exception:
        pass
    return 64 * 1024 * 1024  # conservative default (v7x per-TC physical VMEM)


def _round_up(x: int, mult: int) -> int:
    return -(-x // mult) * mult


def _choose_token_tile(tokens: int, per_row_bytes: int, sublane_mult: int) -> int:
    """Largest token tile that fits a conservative per-step VMEM budget."""
    # Budget only a fraction of physical VMEM for the pipelined working set
    # (double buffers are already counted in per_row_bytes).
    budget = min(_vmem_capacity_bytes() // 4, 24 * 1024 * 1024)
    tm = (budget // max(per_row_bytes, 1)) // sublane_mult * sublane_mult
    tm = max(sublane_mult, min(tm, 1024))
    tokens_rounded = _round_up(tokens, sublane_mult)
    tm = min(tm, tokens_rounded)
    # Prefer >= 2 token tiles so the "parallel" grid axis can shard across the
    # two TensorCores on v7x (no-op on single-TC v5e/v6e).
    if tokens_rounded >= 2 * sublane_mult:
        half = _round_up((tokens_rounded + 1) // 2, sublane_mult)
        tm = min(tm, max(half, sublane_mult))
    return tm


def _vmem_limit_bytes(footprint_bytes: int) -> int:
    # Explicitly raise the scoped-VMEM limit (default is 16 MiB on v5e, 32 MiB on
    # v6e/v7x) but stay well under v7x's 64 MiB physical VMEM.
    return int(min(max(2 * footprint_bytes, 32 * 1024 * 1024), 48 * 1024 * 1024))


# ----------------------------------------------------------------------------
# Kernels: plain allreduce (sum over TP ranks)
# ----------------------------------------------------------------------------

def _sum_kernel_inplace(hs_ref, out_ref, *, tp_size):
    # f32 output: accumulate directly into the resident output block.
    tp = pl.program_id(1)
    if tp_size == 1:
        out_ref[...] = hs_ref[...]
    else:
        @pl.when(tp == 0)
        def _init():
            out_ref[...] = hs_ref[...]

        @pl.when(tp > 0)
        def _accumulate():
            out_ref[...] += hs_ref[...]


def _sum_kernel_acc(hs_ref, out_ref, acc_ref, *, tp_size):
    # Non-f32 output: accumulate in an f32 scratch, cast once at the end.
    tp = pl.program_id(1)
    last = tp_size - 1
    if tp_size == 1:
        out_ref[...] = hs_ref[...].astype(out_ref.dtype)
    else:
        @pl.when(tp == 0)
        def _init():
            acc_ref[...] = hs_ref[...].astype(jnp.float32)

        @pl.when(jnp.logical_and(tp > 0, tp < last))
        def _accumulate():
            acc_ref[...] += hs_ref[...].astype(jnp.float32)

        @pl.when(tp == last)
        def _finalize():
            out_ref[...] = (acc_ref[...]
                            + hs_ref[...].astype(jnp.float32)).astype(out_ref.dtype)


# ----------------------------------------------------------------------------
# Kernels: fused allreduce + residual add + RMSNorm
# ----------------------------------------------------------------------------

def _fused_finalize(resid_f32, w_ref, out_ref, new_res_ref, eps):
    new_res_ref[...] = resid_f32.astype(new_res_ref.dtype)
    var = jnp.mean(resid_f32 * resid_f32, axis=-1, keepdims=True)
    inv = jax.lax.rsqrt(var + eps)
    w = w_ref[...].astype(jnp.float32)                    # (1, H) broadcasts
    out_ref[...] = (resid_f32 * inv * w).astype(out_ref.dtype)


def _fused_kernel_inplace(hs_ref, res_ref, w_ref, out_ref, new_res_ref, *,
                          eps, tp_size):
    # residual dtype is f32: accumulate directly into the resident residual output.
    tp = pl.program_id(1)
    last = tp_size - 1
    if tp_size == 1:
        resid = hs_ref[...].astype(jnp.float32) + res_ref[...]
        _fused_finalize(resid, w_ref, out_ref, new_res_ref, eps)
    else:
        @pl.when(tp == 0)
        def _init():
            new_res_ref[...] = hs_ref[...].astype(jnp.float32) + res_ref[...]

        @pl.when(jnp.logical_and(tp > 0, tp < last))
        def _accumulate():
            new_res_ref[...] += hs_ref[...].astype(jnp.float32)

        @pl.when(tp == last)
        def _finalize():
            resid = new_res_ref[...] + hs_ref[...].astype(jnp.float32)
            _fused_finalize(resid, w_ref, out_ref, new_res_ref, eps)


def _fused_kernel_acc(hs_ref, res_ref, w_ref, out_ref, new_res_ref, acc_ref, *,
                      eps, tp_size):
    # Generic-dtype residual: accumulate in an f32 scratch.
    tp = pl.program_id(1)
    last = tp_size - 1
    if tp_size == 1:
        resid = hs_ref[...].astype(jnp.float32) + res_ref[...].astype(jnp.float32)
        _fused_finalize(resid, w_ref, out_ref, new_res_ref, eps)
    else:
        @pl.when(tp == 0)
        def _init():
            acc_ref[...] = hs_ref[...].astype(jnp.float32)

        @pl.when(jnp.logical_and(tp > 0, tp < last))
        def _accumulate():
            acc_ref[...] += hs_ref[...].astype(jnp.float32)

        @pl.when(tp == last)
        def _finalize():
            resid = (acc_ref[...] + hs_ref[...].astype(jnp.float32)
                     + res_ref[...].astype(jnp.float32))
            _fused_finalize(resid, w_ref, out_ref, new_res_ref, eps)


# ----------------------------------------------------------------------------
# Wrappers
# ----------------------------------------------------------------------------

def allreduce_sum(hidden_shards, *, token_tile=None):
    """hidden_shards: (TP, T, H) -> (T, H) sum over TP."""
    tp, tokens, hidden = hidden_shards.shape
    dtype = hidden_shards.dtype
    in_sz = jnp.dtype(dtype).itemsize
    use_inplace = jnp.dtype(dtype) == jnp.float32

    sub = _sublane_multiple(dtype)
    # double-buffered shard in + double-buffered out + optional f32 accumulator
    per_row = hidden * (2 * in_sz + 2 * in_sz + (0 if use_inplace else 4))
    tm = token_tile or _choose_token_tile(tokens, per_row, sub)
    grid = (pl.cdiv(tokens, tm), tp)
    footprint = tm * per_row

    if use_inplace:
        kernel = functools.partial(_sum_kernel_inplace, tp_size=tp)
        scratch = []
    else:
        kernel = functools.partial(_sum_kernel_acc, tp_size=tp)
        scratch = [pltpu.VMEM((tm, hidden), jnp.float32)]

    return pl.pallas_call(
        kernel,
        out_shape=jax.ShapeDtypeStruct((tokens, hidden), dtype),
        grid_spec=pltpu.PrefetchScalarGridSpec(
            num_scalar_prefetch=0,
            grid=grid,
            in_specs=[
                # TP dim squeezed (block size None) -> kernel sees (tm, H).
                pl.BlockSpec((None, tm, hidden), lambda i, r: (r, i, 0)),
            ],
            # Output block index independent of r -> resident accumulator across TP.
            out_specs=pl.BlockSpec((tm, hidden), lambda i, r: (i, 0)),
            scratch_shapes=scratch,
        ),
        compiler_params=pltpu.CompilerParams(
            dimension_semantics=("parallel", "arbitrary"),
            vmem_limit_bytes=_vmem_limit_bytes(footprint),
        ),
    )(hidden_shards)


def allreduce_residual_rmsnorm(hidden_shards, residual, norm_weight, eps,
                               *, token_tile=None):
    """hidden_shards: (TP, T, H), residual: (T, H), norm_weight: (H,)."""
    tp, tokens, hidden = hidden_shards.shape
    assert residual.shape == (tokens, hidden)
    assert norm_weight.shape == (hidden,)

    in_sz = jnp.dtype(hidden_shards.dtype).itemsize
    res_sz = jnp.dtype(residual.dtype).itemsize
    out_sz = jnp.dtype(hidden_shards.dtype).itemsize
    use_inplace = jnp.dtype(residual.dtype) == jnp.float32

    sub = _sublane_multiple(hidden_shards.dtype, residual.dtype)
    # per token row: shard in (2x) + residual in (2x) + norm out (2x)
    #                + residual out (2x) + optional f32 accumulator scratch
    per_row = hidden * (2 * in_sz + 2 * res_sz + 2 * out_sz + 2 * res_sz
                        + (0 if use_inplace else 4))
    tm = token_tile or _choose_token_tile(tokens, per_row, sub)
    grid = (pl.cdiv(tokens, tm), tp)
    footprint = tm * per_row + 2 * hidden * jnp.dtype(norm_weight.dtype).itemsize

    w2d = norm_weight.reshape(1, hidden)
    if use_inplace:
        kernel = functools.partial(_fused_kernel_inplace, eps=float(eps), tp_size=tp)
        scratch = []
    else:
        kernel = functools.partial(_fused_kernel_acc, eps=float(eps), tp_size=tp)
        scratch = [pltpu.VMEM((tm, hidden), jnp.float32)]

    out_hidden, out_residual = pl.pallas_call(
        kernel,
        out_shape=(
            jax.ShapeDtypeStruct((tokens, hidden), hidden_shards.dtype),
            jax.ShapeDtypeStruct((tokens, hidden), residual.dtype),
        ),
        grid_spec=pltpu.PrefetchScalarGridSpec(
            num_scalar_prefetch=0,
            grid=grid,
            in_specs=[
                # Shard for rank r, token tile i; TP dim squeezed out of the kernel view.
                pl.BlockSpec((None, tm, hidden), lambda i, r: (r, i, 0)),
                # Residual block index independent of r -> fetched once per token tile.
                pl.BlockSpec((tm, hidden), lambda i, r: (i, 0)),
                # Weight block index constant -> resident across the whole grid.
                pl.BlockSpec((1, hidden), lambda i, r: (0, 0)),
            ],
            out_specs=[
                pl.BlockSpec((tm, hidden), lambda i, r: (i, 0)),
                pl.BlockSpec((tm, hidden), lambda i, r: (i, 0)),
            ],
            scratch_shapes=scratch,
        ),
        compiler_params=pltpu.CompilerParams(
            dimension_semantics=("parallel", "arbitrary"),
            vmem_limit_bytes=_vmem_limit_bytes(footprint),
        ),
    )(hidden_shards, residual, w2d)
    return out_hidden, out_residual


# ----------------------------------------------------------------------------
# Module-level stand-in for tensorrt_llm AllReduce
# ----------------------------------------------------------------------------

class AllReduceFusionOp:
    NONE = 0
    RESIDUAL_RMS_NORM = 1


class AllReduceParams:
    def __init__(self, fusion_op=AllReduceFusionOp.NONE, residual=None,
                 norm_weight=None, eps=1e-6, enable_allreduce=True):
        self.fusion_op = fusion_op
        self.residual = residual
        self.norm_weight = norm_weight
        self.eps = eps
        self.enable_allreduce = enable_allreduce


class AllReduce:
    """JAX/Pallas stand-in for tensorrt_llm AllReduce (NONE / RESIDUAL_RMS_NORM)."""

    def __init__(self, tp_size: int):
        self.tp_size = tp_size
        # TODO(synk): a real multi-chip allreduce would use pltpu.make_async_remote_copy
        # + pltpu.get_barrier_semaphore + CompilerParams(collective_id=N) in a ring /
        # one-shot pattern; not representable in a single-process synthetic script, so
        # the TP sum is simulated over stacked per-rank shards.
        self.workspace = None

    def forward(self, input_shards, *, all_reduce_params=None):
        if self.tp_size == 1 or (all_reduce_params is not None
                                 and not all_reduce_params.enable_allreduce):
            return input_shards
        if all_reduce_params is None:
            all_reduce_params = AllReduceParams()

        fusion_op = all_reduce_params.fusion_op
        if fusion_op == AllReduceFusionOp.NONE:
            return allreduce_sum(input_shards)
        if fusion_op == AllReduceFusionOp.RESIDUAL_RMS_NORM:
            return allreduce_residual_rmsnorm(
                input_shards,
                all_reduce_params.residual,
                all_reduce_params.norm_weight,
                all_reduce_params.eps,
            )
        # TODO(synk): FP8 / NVFP4 quantization fusion variants are not implemented.
        raise NotImplementedError(f"fusion_op {fusion_op} not supported")


# ----------------------------------------------------------------------------
# References + test
# ----------------------------------------------------------------------------

def _reference_sum(hidden_shards):
    return jnp.sum(hidden_shards.astype(jnp.float32), axis=0).astype(hidden_shards.dtype)


def _reference_fused(hidden_shards, residual, norm_weight, eps):
    reduced = jnp.sum(hidden_shards.astype(jnp.float32), axis=0)
    resid = reduced + residual.astype(jnp.float32)
    var = jnp.mean(resid * resid, axis=-1, keepdims=True)
    normed = resid * jax.lax.rsqrt(var + eps) * norm_weight.astype(jnp.float32)
    return normed.astype(hidden_shards.dtype), resid.astype(residual.dtype)


if __name__ == "__main__":
    key = jax.random.PRNGKey(0)
    k1, k2 = jax.random.split(key, 2)

    TP, TOKENS, HIDDEN = 4, 64, 256
    eps = 1e-6

    hidden_shards = jax.random.normal(k1, (TP, TOKENS, HIDDEN), dtype=jnp.float32)
    residual = jax.random.normal(k2, (TOKENS, HIDDEN), dtype=jnp.float32)
    norm_weight = (1.0 + 0.01 * jnp.arange(HIDDEN, dtype=jnp.float32))

    module = AllReduce(tp_size=TP)

    # fusion_op = RESIDUAL_RMS_NORM (f32 -> in-place accumulation into residual_out)
    params = AllReduceParams(fusion_op=AllReduceFusionOp.RESIDUAL_RMS_NORM,
                             residual=residual, norm_weight=norm_weight, eps=eps)
    out_hidden, out_residual = module.forward(hidden_shards, all_reduce_params=params)
    jax.block_until_ready((out_hidden, out_residual))

    ref_hidden, ref_residual = _reference_fused(hidden_shards, residual, norm_weight, eps)
    assert out_hidden.shape == ref_hidden.shape
    assert out_residual.shape == ref_residual.shape
    assert jnp.allclose(out_hidden, ref_hidden, atol=2e-5, rtol=2e-5)
    assert jnp.allclose(out_residual, ref_residual, atol=2e-5, rtol=2e-5)

    # fusion_op = NONE, f32 (in-place accumulation into output)
    out_sum = module.forward(hidden_shards,
                             all_reduce_params=AllReduceParams(AllReduceFusionOp.NONE))
    jax.block_until_ready(out_sum)
    assert jnp.allclose(out_sum, _reference_sum(hidden_shards), atol=2e-5, rtol=2e-5)

    # fusion_op = NONE, bf16 (exercises the f32 scratch-accumulator path)
    hidden_bf16 = hidden_shards.astype(jnp.bfloat16)
    out_sum_bf16 = module.forward(hidden_bf16,
                                  all_reduce_params=AllReduceParams(AllReduceFusionOp.NONE))
    jax.block_until_ready(out_sum_bf16)
    ref_bf16 = _reference_sum(hidden_bf16)
    assert jnp.allclose(out_sum_bf16.astype(jnp.float32),
                        ref_bf16.astype(jnp.float32), atol=5e-2, rtol=5e-2)

    print("KERNEL_OK")
</pallas_src>

<mosaic_0001>
module attributes {stable_mosaic.version = 11 : i64} {
  func.func @_fused_kernel_inplace(%arg0: i32, %arg1: i32, %arg2: memref<1x32x256xf32, #tpu.memory_space<vmem>>, %arg3: memref<32x256xf32, #tpu.memory_space<vmem>>, %arg4: memref<1x256xf32, #tpu.memory_space<vmem>>, %arg5: memref<32x256xf32, #tpu.memory_space<vmem>>, %arg6: memref<32x256xf32, #tpu.memory_space<vmem>>) attributes {dimension_semantics = [#tpu.dimension_semantics<parallel>, #tpu.dimension_semantics<arbitrary>], iteration_bounds = array<i64: 2, 4>, scalar_prefetch = 0 : i64, scratch_operands = 0 : i64, tpu.core_type = #tpu.core_type<tc>, window_params = [{transform_indices = @transform_0, window_bounds = array<i64: 1, 32, 256>}, {transform_indices = @transform_1, window_bounds = array<i64: 32, 256>}, {pipeline_mode = #tpu.pipeline_mode<synchronous>, transform_indices = @transform_2, window_bounds = array<i64: 1, 256>}, {transform_indices = @transform_3, window_bounds = array<i64: 32, 256>}, {transform_indices = @transform_4, window_bounds = array<i64: 32, 256>}]} {
    %c0_i32 = arith.constant 0 : i32
    %0 = arith.cmpi eq, %arg1, %c0_i32 : i32
    %1 = arith.extui %0 : i1 to i32
    %c0_i32_0 = arith.constant 0 : i32
    %2 = arith.cmpi ne, %1, %c0_i32_0 : i32
    scf.if %2 {
      %c0 = arith.constant 0 : index
      %c0_5 = arith.constant 0 : index
      %c0_6 = arith.constant 0 : index
      %11 = vector.load %arg2[%c0, %c0_5, %c0_6] : memref<1x32x256xf32, #tpu.memory_space<vmem>>, vector<1x32x256xf32>
      %12 = vector.shape_cast %11 : vector<1x32x256xf32> to vector<32x256xf32>
      %c0_7 = arith.constant 0 : index
      %c0_8 = arith.constant 0 : index
      %13 = vector.load %arg3[%c0_7, %c0_8] : memref<32x256xf32, #tpu.memory_space<vmem>>, vector<32x256xf32>
      %14 = arith.addf %12, %13 : vector<32x256xf32>
      %c0_9 = arith.constant 0 : index
      %c0_10 = arith.constant 0 : index
      %15 = vector.load %arg6[%c0_9, %c0_10] : memref<32x256xf32, #tpu.memory_space<vmem>>, vector<32x256xf32>
      tpu.vector_store %arg6[%c0_9, %c0_10], %14 {strides = array<i32>} : memref<32x256xf32, #tpu.memory_space<vmem>>, vector<32x256xf32>,
    } else {
    }
    %c0_i32_1 = arith.constant 0 : i32
    %3 = arith.cmpi sgt, %arg1, %c0_i32_1 : i32
    %c3_i32 = arith.constant 3 : i32
    %4 = arith.cmpi slt, %arg1, %c3_i32 : i32
    %5 = arith.andi %3, %4 : i1
    %6 = arith.extui %5 : i1 to i32
    %c0_i32_2 = arith.constant 0 : i32
    %7 = arith.cmpi ne, %6, %c0_i32_2 : i32
    scf.if %7 {
      %c0 = arith.constant 0 : index
      %c0_5 = arith.constant 0 : index
      %11 = vector.load %arg6[%c0, %c0_5] : memref<32x256xf32, #tpu.memory_space<vmem>>, vector<32x256xf32>
      %c0_6 = arith.constant 0 : index
      %c0_7 = arith.constant 0 : index
      %c0_8 = arith.constant 0 : index
      %12 = vector.load %arg2[%c0_6, %c0_7, %c0_8] : memref<1x32x256xf32, #tpu.memory_space<vmem>>, vector<1x32x256xf32>
      %13 = vector.shape_cast %12 : vector<1x32x256xf32> to vector<32x256xf32>
      %14 = arith.addf %11, %13 : vector<32x256xf32>
      %c0_9 = arith.constant 0 : index
      %c0_10 = arith.constant 0 : index
      %15 = vector.load %arg6[%c0_9, %c0_10] : memref<32x256xf32, #tpu.memory_space<vmem>>, vector<32x256xf32>
      tpu.vector_store %arg6[%c0_9, %c0_10], %14 {strides = array<i32>} : memref<32x256xf32, #tpu.memory_space<vmem>>, vector<32x256xf32>,
    } else {
    }
    %c3_i32_3 = arith.constant 3 : i32
    %8 = arith.cmpi eq, %arg1, %c3_i32_3 : i32
    %9 = arith.extui %8 : i1 to i32
    %c0_i32_4 = arith.constant 0 : i32
    %10 = arith.cmpi ne, %9, %c0_i32_4 : i32
    scf.if %10 {
      %c0 = arith.constant 0 : index
      %c0_5 = arith.constant 0 : index
      %11 = vector.load %arg6[%c0, %c0_5] : memref<32x256xf32, #tpu.memory_space<vmem>>, vector<32x256xf32>
      %c0_6 = arith.constant 0 : index
      %c0_7 = arith.constant 0 : index
      %c0_8 = arith.constant 0 : index
      %12 = vector.load %arg2[%c0_6, %c0_7, %c0_8] : memref<1x32x256xf32, #tpu.memory_space<vmem>>, vector<1x32x256xf32>
      %13 = vector.shape_cast %12 : vector<1x32x256xf32> to vector<32x256xf32>
      %14 = arith.addf %11, %13 : vector<32x256xf32>
      %c0_9 = arith.constant 0 : index
      %c0_10 = arith.constant 0 : index
      %15 = vector.load %arg6[%c0_9, %c0_10] : memref<32x256xf32, #tpu.memory_space<vmem>>, vector<32x256xf32>
      tpu.vector_store %arg6[%c0_9, %c0_10], %14 {strides = array<i32>} : memref<32x256xf32, #tpu.memory_space<vmem>>, vector<32x256xf32>,
      %16 = arith.mulf %14, %14 : vector<32x256xf32>
      %cst = arith.constant dense<0.000000e+00> : vector<32xf32>
      %17 = vector.multi_reduction <add>, %16, %cst [1] : vector<32x256xf32> to vector<32xf32>
      %18 = vector.shape_cast %17 : vector<32xf32> to vector<32x1xf32>
      %cst_11 = arith.constant 2.560000e+02 : f32
      %19 = vector.broadcast %cst_11 : f32 to vector<32x1xf32>
      %20 = arith.divf %18, %19 : vector<32x1xf32>
      %cst_12 = arith.constant 9.99999997E-7 : f32
      %21 = vector.broadcast %cst_12 : f32 to vector<32x1xf32>
      %22 = arith.addf %20, %21 : vector<32x1xf32>
      %23 = math.rsqrt %22 : vector<32x1xf32>
      %c0_13 = arith.constant 0 : index
      %c0_14 = arith.constant 0 : index
      %24 = vector.load %arg4[%c0_13, %c0_14] : memref<1x256xf32, #tpu.memory_space<vmem>>, vector<1x256xf32>
      %25 = vector.broadcast %23 : vector<32x1xf32> to vector<32x256xf32>
      %26 = arith.mulf %14, %25 : vector<32x256xf32>
      %27 = vector.broadcast %24 : vector<1x256xf32> to vector<32x256xf32>
      %28 = arith.mulf %26, %27 : vector<32x256xf32>
      %c0_15 = arith.constant 0 : index
      %c0_16 = arith.constant 0 : index
      %29 = vector.load %arg5[%c0_15, %c0_16] : memref<32x256xf32, #tpu.memory_space<vmem>>, vector<32x256xf32>
      tpu.vector_store %arg5[%c0_15, %c0_16], %28 {strides = array<i32>} : memref<32x256xf32, #tpu.memory_space<vmem>>, vector<32x256xf32>,
    } else {
    }
    return
  }
  func.func @transform_0(%arg0: i32, %arg1: i32) -> (i32, i32, i32) {
    %c0_i32 = arith.constant 0 : i32
    %c0_i32_0 = arith.constant 0 : i32
    return %arg1, %arg0, %c0_i32 : i32, i32, i32
  }
  func.func @transform_1(%arg0: i32, %arg1: i32) -> (i32, i32) {
    %c0_i32 = arith.constant 0 : i32
    %c0_i32_0 = arith.constant 0 : i32
    return %arg0, %c0_i32 : i32, i32
  }
  func.func @transform_2(%arg0: i32, %arg1: i32) -> (i32, i32) {
    %c0_i32 = arith.constant 0 : i32
    %c0_i32_0 = arith.constant 0 : i32
    %c0_i32_1 = arith.constant 0 : i32
    return %c0_i32, %c0_i32_0 : i32, i32
  }
  func.func @transform_3(%arg0: i32, %arg1: i32) -> (i32, i32) {
    %c0_i32 = arith.constant 0 : i32
    %c0_i32_0 = arith.constant 0 : i32
    return %arg0, %c0_i32 : i32, i32
  }
  func.func @transform_4(%arg0: i32, %arg1: i32) -> (i32, i32) {
    %c0_i32 = arith.constant 0 : i32
    %c0_i32_0 = arith.constant 0 : i32
    return %arg0, %c0_i32 : i32, i32
  }
}

</mosaic_0001>

<llo_original>
// kernel: tpu_custom_call.1
$region0: #{tpu_custom_call.1}
  #allocation0 [shape = 'u32[]', space=smem, size = 0x4, offset = 0x4, fixed_abs, tag = 'smem constant byte address 0x4 - core index']
  #allocation1 [shape = 'u32[72,128]{1,0:T(1,128)}', space=vmem, size = 0x9000, scoped, tag = 'internal scratch']
  %s0 = inlined_call_operand.hbm [shape: f32[4,64,256], index: 0, kind: input, shape index: {}]
  %s1 = inlined_call_operand.hbm [shape: f32[64,256], index: 1, kind: input, shape index: {}]
  %s2 = inlined_call_operand.hbm [shape: f32[1,256], index: 2, kind: input, shape index: {}]
  %s3 = inlined_call_operand.hbm [shape: f32[64,256], index: 3, kind: output, shape index: {0}]
  %s4 = inlined_call_operand.hbm [shape: f32[64,256], index: 4, kind: output, shape index: {1}]
  %5 = xla_tuple %s3, %s4
  %s6 = sld [smem:[#allocation0]]
  $region77: #{tpu_custom_call.1} parent=0
    _
  %s8 = ssub.s32 1, %s6
  %s9 = scalar_select 0, %s8, %s6
  $region1: #{tpu_custom_call.1} parent=0
    #allocation2 [shape = 'u8[65536]{0}', space=vmem, size = 0x10000, scoped, tag = 'input window, operand 0']
    #allocation3 [shape = 's32[2]{0}', space=sflag, size = 0x8, scoped, tag = 'scoped memory for tpu_custom_call.1']
    #allocation4 [shape = 's32[2]{0}', space=sflag, size = 0x8, scoped, tag = 'scoped memory for tpu_custom_call.1']
    #allocation5 [shape = 'u8[65536]{0}', space=vmem, size = 0x10000, scoped, tag = 'input window, operand 1']
    #allocation6 [shape = 's32[2]{0}', space=sflag, size = 0x8, scoped, tag = 'scoped memory for tpu_custom_call.1']
    #allocation7 [shape = 'u8[1024]{0}', space=vmem, size = 0x400, scoped, tag = 'input window, operand 2, single buffered']
    #allocation8 [shape = 'u8[65536]{0}', space=vmem, size = 0x10000, scoped, tag = 'output window, operand 0']
    #allocation9 [shape = 'u8[65536]{0}', space=vmem, size = 0x10000, scoped, tag = 'output window, operand 1']
    #allocation10 [shape = 's32[2]{0}', space=sflag, size = 0x8, scoped, tag = 'scoped memory for tpu_custom_call.1']
    %10 = vsyncpa [#allocation3], 0
    %s11 = scalar_lea.sflag [#allocation3], 1
    %12 = vsyncpa %s11, 0
    %13 = vsyncpa [#allocation6], 0
    %s14 = scalar_lea.sflag [#allocation6], 1
    %15 = vsyncpa %s14, 0
    %16 = vsyncpa [#allocation4], 0
    %s17 = scalar_lea.sflag [#allocation4], 1
    %18 = vsyncpa %s17, 0
    %19 = vsyncpa [#allocation10], 0
    %s20 = scalar_lea.sflag [#allocation10], 1
    %21 = vsyncpa %s20, 0
    loop: start=0, step=1, limit=10
    $region2: #{tpu_custom_call.1} parent=1 // loop_pre_header
      _
    $region3: #{tpu_custom_call.1} parent=1 // loop_header
      %s23 = sphi 0, %s27
      %p24 = scmp.ge.s32.totalorder %s23, 10
      %s30 = sphi 0, %s42
      %s31 = sphi 0, %s38
      %s32 = sphi 0, %s30
      %s33 = sphi 0, %s31
      %s34 = sphi 0, %s32
      %s35 = sphi 0, %s33
      %s47 = sphi 0, %s49
      %s50 = sphi 0, %s47
      %s51 = sphi 0, %s50
      %s67 = sphi 0, %s51
      %s73 = sphi 0, %s75
      %s76 = sphi 0, %s73
      %s77 = sphi 0, %s76
      %s93 = sphi 0, %s77
      %s97 = sphi 0, %s97
      %s99 = sphi 0, %s97
      %s100 = sphi 0, %s99
      %s114 = sphi 0, %s100
      %s120 = sphi 0, %s122
      %s123 = sphi 0, %s120
      %s124 = sphi 0, %s123
      %s140 = sphi 0, %s124
      %s146 = sphi 0, %s148
      %s149 = sphi 0, %s146
      %s150 = sphi 0, %s149
      %s166 = sphi 0, %s150
    $region4: #{tpu_custom_call.1} parent=1 // loop_header_branch
      %26 = sbr.rel (%p24) target = $region8
    $region5: #{tpu_custom_call.1} parent=1 // loop_body
      %s28 = ssub.s32 %s23, 1
      %s29 = ssub.s32 %s23, 2
      %s36 = sadd.s32 1, %s31
      %p37 = scmp.ge.s32.totalorder %s36, 4
      %s38 = scalar_select %p37, 0, %s36
      %s39 = sadd.s32 1, %s30
      %s40 = scalar_select %p37, %s39, %s30
      %p41 = scmp.ge.s32.totalorder %s40, 2
      %s42 = scalar_select %p41, 0, %s40
      %s43 = ssub.s32 %s31, %s38
      %s44 = ssub.s32 %s30, %s42
      %s45 = sor.u32 %s43, %s44
      %p46 = scmp.eq.s32.totalorder %s45, 0
      %s48 = sadd.s32 %s47, 1
      %s49 = scalar_select %p46, %s47, %s48
      %p52 = pneg %p46
      %p53 = scmp.eq.s32.totalorder %s23, 7
      %p54 = por %p52, %p53
      %p55 = scmp.ne.s32.totalorder %s47, %s50
      %p56 = scmp.eq.s32.totalorder %s23, 0
      %p57 = por %p55, %p56
      %p58 = scmp.ne.s32.totalorder %s47, %s50
      %p59 = scmp.eq.s32.totalorder %s28, 7
      %p60 = por %p58, %p59
      %p61 = scmp.ne.s32.totalorder %s50, %s51
      %p62 = scmp.eq.s32.totalorder %s28, 0
      %p63 = por %p61, %p62
      %p64 = scmp.ne.s32.totalorder %s50, %s51
      %p65 = scmp.eq.s32.totalorder %s29, 7
      %p66 = por %p64, %p65
      %p68 = scmp.ne.s32.totalorder %s51, %s67
      %p69 = scmp.eq.s32.totalorder %s29, 0
      %p70 = por %p68, %p69
      %s71 = ssub.s32 %s30, %s42
      %p72 = scmp.eq.s32.totalorder %s71, 0
      %s74 = sadd.s32 %s73, 1
      %s75 = scalar_select %p72, %s73, %s74
      %p78 = pneg %p72
      %p79 = scmp.eq.s32.totalorder %s23, 7
      %p80 = por %p78, %p79
      %p81 = scmp.ne.s32.totalorder %s73, %s76
      %p82 = scmp.eq.s32.totalorder %s23, 0
      %p83 = por %p81, %p82
      %p84 = scmp.ne.s32.totalorder %s73, %s76
      %p85 = scmp.eq.s32.totalorder %s28, 7
      %p86 = por %p84, %p85
      %p87 = scmp.ne.s32.totalorder %s76, %s77
      %p88 = scmp.eq.s32.totalorder %s28, 0
      %p89 = por %p87, %p88
      %p90 = scmp.ne.s32.totalorder %s76, %s77
      %p91 = scmp.eq.s32.totalorder %s29, 7
      %p92 = por %p90, %p91
      %p94 = scmp.ne.s32.totalorder %s77, %s93
      %p95 = scmp.eq.s32.totalorder %s29, 0
      %p96 = por %p94, %p95
      %s98 = sadd.s32 %s97, 1
      %p101 = scmp.eq.s32.totalorder %s23, 7
      %p102 = scmp.ne.s32.totalorder %s97, %s99
      %p103 = scmp.eq.s32.totalorder %s23, 0
      %p104 = por %p102, %p103
      %p105 = scmp.ne.s32.totalorder %s97, %s99
      %p106 = scmp.eq.s32.totalorder %s28, 7
      %p107 = por %p105, %p106
      %p108 = scmp.ne.s32.totalorder %s99, %s100
      %p109 = scmp.eq.s32.totalorder %s28, 0
      %p110 = por %p108, %p109
      %p111 = scmp.ne.s32.totalorder %s99, %s100
      %p112 = scmp.eq.s32.totalorder %s29, 7
      %p113 = por %p111, %p112
      %p115 = scmp.ne.s32.totalorder %s100, %s114
      %p116 = scmp.eq.s32.totalorder %s29, 0
      %p117 = por %p115, %p116
      %s118 = ssub.s32 %s30, %s42
      %p119 = scmp.eq.s32.totalorder %s118, 0
      %s121 = sadd.s32 %s120, 1
      %s122 = scalar_select %p119, %s120, %s121
      %p125 = pneg %p119
      %p126 = scmp.eq.s32.totalorder %s23, 7
      %p127 = por %p125, %p126
      %p128 = scmp.ne.s32.totalorder %s120, %s123
      %p129 = scmp.eq.s32.totalorder %s23, 0
      %p130 = por %p128, %p129
      %p131 = scmp.ne.s32.totalorder %s120, %s123
      %p132 = scmp.eq.s32.totalorder %s28, 7
      %p133 = por %p131, %p132
      %p134 = scmp.ne.s32.totalorder %s123, %s124
      %p135 = scmp.eq.s32.totalorder %s28, 0
      %p136 = por %p134, %p135
      %p137 = scmp.ne.s32.totalorder %s123, %s124
      %p138 = scmp.eq.s32.totalorder %s29, 7
      %p139 = por %p137, %p138
      %p141 = scmp.ne.s32.totalorder %s124, %s140
      %p142 = scmp.eq.s32.totalorder %s29, 0
      %p143 = por %p141, %p142
      %s144 = ssub.s32 %s30, %s42
      %p145 = scmp.eq.s32.totalorder %s144, 0
      %s147 = sadd.s32 %s146, 1
      %s148 = scalar_select %p145, %s146, %s147
      %p151 = pneg %p145
      %p152 = scmp.eq.s32.totalorder %s23, 7
      %p153 = por %p151, %p152
      %p154 = scmp.ne.s32.totalorder %s146, %s149
      %p155 = scmp.eq.s32.totalorder %s23, 0
      %p156 = por %p154, %p155
      %p157 = scmp.ne.s32.totalorder %s146, %s149
      %p158 = scmp.eq.s32.totalorder %s28, 7
      %p159 = por %p157, %p158
      %p160 = scmp.ne.s32.totalorder %s149, %s150
      %p161 = scmp.eq.s32.totalorder %s28, 0
      %p162 = por %p160, %p161
      %p163 = scmp.ne.s32.totalorder %s149, %s150
      %p164 = scmp.eq.s32.totalorder %s29, 7
      %p165 = por %p163, %p164
      %p167 = scmp.ne.s32.totalorder %s150, %s166
      %p168 = scmp.eq.s32.totalorder %s29, 0
      %p169 = por %p167, %p168
      %p170 = scmp.le.s32.totalorder 1, %s23
      %p171 = scmp.lt.s32.totalorder %s23, 9
      %p172 = pnand %p170, %p171
      %p173 = pneg %p172
      // Predicated region
      $region9: #{tpu_custom_call.1} parent=5 // pred_check
        _
      $region10: #{tpu_custom_call.1} parent=5 // pred_check_branch
        %175 = sbr.rel (%p172) target = $region12
      $region11: #{tpu_custom_call.1} parent=5 // pred_region
        %s176 = ssub.s32 %s23, 1
        // Predicated region
        $region13: #{tpu_custom_call.1} parent=11 // pred_check
          %p177 = pneg %p110
        $region14: #{tpu_custom_call.1} parent=11 // pred_check_branch
          %179 = sbr.rel (%p177) target = $region16
        $region15: #{tpu_custom_call.1} parent=11 // pred_region
          %181 = vsyncadd [#allocation6], 0
          %s183 = sshll.u32 %s2, 4
          %s184 = int_to_ptr.hbm [resolvable:$true] %s183
          %s185 = sshll.u32 [#allocation7], 4
          %s186 = int_to_ptr.vmem [resolvable:$true] %s185
          %188 = dma.hbm_to_vmem [thread:$0]  %s184, 32, %s186, [#allocation6]
        $region16: #{tpu_custom_call.1} parent=11 // pred_fallthru
          _
      $region12: #{tpu_custom_call.1} parent=5 // pred_fallthru
        _
      %p189 = scmp.lt.s32.totalorder %s23, 8
      // Predicated region
      $region17: #{tpu_custom_call.1} parent=5 // pred_check
        %p190 = pneg %p189
      $region18: #{tpu_custom_call.1} parent=5 // pred_check_branch
        %192 = sbr.rel (%p190) target = $region20
      $region19: #{tpu_custom_call.1} parent=5 // pred_region
        // Predicated region
        $region21: #{tpu_custom_call.1} parent=19 // pred_check
          %p193 = pneg %p57
        $region22: #{tpu_custom_call.1} parent=19 // pred_check_branch
          %195 = sbr.rel (%p193) target = $region24
        $region23: #{tpu_custom_call.1} parent=19 // pred_region
          %s196 = sand.u32 %s47, 1
          %s197 = scalar_lea.sflag [#allocation3], %s196
          %s198 = sand.u32 %s47, 1
          %s199 = smul.addr %s198, 64
          %s200 = scalar_lea.vmem [#allocation2], %s199
          %s201 = smul.u32 4, %s30
          %203 = vsyncadd %s197, 0
          %s204 = smul.addr %s201, 2
          %s205 = smul.addr %s31, 16
          %s206 = sadd.s32 %s204, %s205
          %s207 = smul.addr %s206, 8
          %s208 = scalar_lea.hbm %s0, %s207
          %s209 = sshll.u32 %s208, 4
          %s210 = int_to_ptr.hbm [resolvable:$true] %s209
          %s211 = sshll.u32 %s200, 4
          %s212 = int_to_ptr.vmem [resolvable:$true] %s211
          %217 = dma.hbm_to_vmem [thread:$0]  %s210, 1024, %s212, %s197, 256, 256, 16
        $region24: #{tpu_custom_call.1} parent=19 // pred_fallthru
          _
        // Predicated region
        $region25: #{tpu_custom_call.1} parent=19 // pred_check
          %p218 = pneg %p83
        $region26: #{tpu_custom_call.1} parent=19 // pred_check_branch
          %220 = sbr.rel (%p218) target = $region28
        $region27: #{tpu_custom_call.1} parent=19 // pred_region
          %s221 = sand.u32 %s23, 1
          %s222 = scalar_lea.sflag [#allocation6], %s221
          %s223 = sand.u32 %s73, 1
          %s224 = smul.addr %s223, 64
          %s225 = scalar_lea.vmem [#allocation5], %s224
          %s226 = smul.u32 4, %s30
          %228 = vsyncadd %s222, 0
          %s229 = smul.addr %s226, 2
          %s230 = smul.addr %s229, 8
          %s231 = scalar_lea.hbm %s1, %s230
          %s232 = sshll.u32 %s231, 4
          %s233 = int_to_ptr.hbm [resolvable:$true] %s232
          %s234 = sshll.u32 %s225, 4
          %s235 = int_to_ptr.vmem [resolvable:$true] %s234
          %240 = dma.hbm_to_vmem [thread:$0]  %s233, 1024, %s235, %s222, 256, 256, 16
        $region28: #{tpu_custom_call.1} parent=19 // pred_fallthru
          _
      $region20: #{tpu_custom_call.1} parent=5 // pred_fallthru
        _
      %p241 = scmp.le.s32.totalorder 1, %s23
      %p242 = scmp.lt.s32.totalorder %s23, 9
      %p243 = pnand %p241, %p242
      %p244 = pneg %p243
      // Predicated region
      $region29: #{tpu_custom_call.1} parent=5 // pred_check
        _
      $region30: #{tpu_custom_call.1} parent=5 // pred_check_branch
        %246 = sbr.rel (%p243) target = $region32
      $region31: #{tpu_custom_call.1} parent=5 // pred_region
        %s247 = ssub.s32 %s23, 1
        %s248 = sand.u32 %s50, 1
        %s249 = scalar_lea.sflag [#allocation3], %s248
        %s250 = sand.u32 %s50, 1
        %s251 = smul.addr %s250, 64
        %s252 = scalar_lea.vmem [#allocation2], %s251
        // Predicated region
        $region33: #{tpu_custom_call.1} parent=31 // pred_check
          %p253 = pneg %p63
        $region34: #{tpu_custom_call.1} parent=31 // pred_check_branch
          %255 = sbr.rel (%p253) target = $region36
        $region35: #{tpu_custom_call.1} parent=31 // pred_region
          %257 = dma.done %s249, 1024
        $region36: #{tpu_custom_call.1} parent=31 // pred_fallthru
          _
        %s258 = sand.u32 %s28, 1
        %s259 = scalar_lea.sflag [#allocation6], %s258
        %s260 = sand.u32 %s76, 1
        %s261 = smul.addr %s260, 64
        %s262 = scalar_lea.vmem [#allocation5], %s261
        // Predicated region
        $region37: #{tpu_custom_call.1} parent=31 // pred_check
          %p263 = pneg %p89
        $region38: #{tpu_custom_call.1} parent=31 // pred_check_branch
          %265 = sbr.rel (%p263) target = $region40
        $region39: #{tpu_custom_call.1} parent=31 // pred_region
          %267 = dma.done %s259, 1024
        $region40: #{tpu_custom_call.1} parent=31 // pred_fallthru
          _
        // Predicated region
        $region41: #{tpu_custom_call.1} parent=31 // pred_check
          %p268 = pneg %p110
        $region42: #{tpu_custom_call.1} parent=31 // pred_check_branch
          %270 = sbr.rel (%p268) target = $region44
        $region43: #{tpu_custom_call.1} parent=31 // pred_region
          %272 = dma.done [#allocation6], 32
        $region44: #{tpu_custom_call.1} parent=31 // pred_fallthru
          _
        %s273 = sand.u32 %s50, 1
        %s274 = scalar_lea.sflag [#allocation3], %s273
        %s275 = sand.u32 %s50, 1
        %s276 = smul.addr %s275, 64
        %s277 = scalar_lea.vmem [#allocation2], %s276
        %p278 = pneg %p63
        %p279 = pneg %p60
        %s280 = sand.u32 %s28, 1
        %s281 = scalar_lea.sflag [#allocation6], %s280
        %s282 = sand.u32 %s76, 1
        %s283 = smul.addr %s282, 64
        %s284 = scalar_lea.vmem [#allocation5], %s283
        %p285 = pneg %p89
        %p286 = pneg %p86
        %p287 = pneg %p110
        %p288 = pneg %p107
        %p289 = pneg %p136
        %p290 = pneg %p133
        %s291 = sand.u32 %s123, 1
        %s292 = scalar_lea.sflag [#allocation4], %s291
        %s293 = sand.u32 %s123, 1
        %s294 = smul.addr %s293, 64
        %s295 = scalar_lea.vmem [#allocation8], %s294
        %p296 = pneg %p162
        %p297 = pneg %p159
        %s298 = sand.u32 %s149, 1
        %s299 = scalar_lea.sflag [#allocation10], %s298
        %s300 = sand.u32 %s149, 1
        %s301 = smul.addr %s300, 64
        %s302 = scalar_lea.vmem [#allocation9], %s301
        %s303 = smul.u32 4, %s32
        %s304 = smul.u32 4, %s32
        %s305 = smul.u32 4, %s32
        %s306 = smul.u32 4, %s32
        %p307 = scmp.eq.s32.totalorder %s33, 0
        // Predicated region
        $region45: #{tpu_custom_call.1} parent=31 // pred_check
          %p308 = pneg %p307
        $region46: #{tpu_custom_call.1} parent=31 // pred_check_branch
          %310 = sbr.rel (%p308) target = $region48
        $region47: #{tpu_custom_call.1} parent=31 // pred_region
          %v311 = vld [vmem:[%s252] sm:$0xff]
          %v312 = vld [vmem:[%s252 + $0x8] sm:$0xff]
          %v313 = vld [vmem:[%s252 + $0x10] sm:$0xff]
          %v314 = vld [vmem:[%s252 + $0x18] sm:$0xff]
          %v315 = vld [vmem:[%s252 + $0x20] sm:$0xff]
          %v316 = vld [vmem:[%s252 + $0x28] sm:$0xff]
          %v317 = vld [vmem:[%s252 + $0x30] sm:$0xff]
          %v318 = vld [vmem:[%s252 + $0x38] sm:$0xff]
          %v319 = vld [vmem:[%s262] sm:$0xff]
          %v320 = vld [vmem:[%s262 + $0x8] sm:$0xff]
          %v321 = vld [vmem:[%s262 + $0x10] sm:$0xff]
          %v322 = vld [vmem:[%s262 + $0x18] sm:$0xff]
          %v323 = vld [vmem:[%s262 + $0x20] sm:$0xff]
          %v324 = vld [vmem:[%s262 + $0x28] sm:$0xff]
          %v325 = vld [vmem:[%s262 + $0x30] sm:$0xff]
          %v326 = vld [vmem:[%s262 + $0x38] sm:$0xff]
          %v327 = vadd.f32 %v311, %v319
          %v328 = vadd.f32 %v312, %v320
          %v329 = vadd.f32 %v313, %v321
          %v330 = vadd.f32 %v314, %v322
          %v331 = vadd.f32 %v315, %v323
          %v332 = vadd.f32 %v316, %v324
          %v333 = vadd.f32 %v317, %v325
          %v334 = vadd.f32 %v318, %v326
          %335 = vst [vmem:[%s302] sm:$0xff] %v327
          %336 = vst [vmem:[%s302 + $0x8] sm:$0xff] %v328
          %337 = vst [vmem:[%s302 + $0x10] sm:$0xff] %v329
          %338 = vst [vmem:[%s302 + $0x18] sm:$0xff] %v330
          %339 = vst [vmem:[%s302 + $0x20] sm:$0xff] %v331
          %340 = vst [vmem:[%s302 + $0x28] sm:$0xff] %v332
          %341 = vst [vmem:[%s302 + $0x30] sm:$0xff] %v333
          %342 = vst [vmem:[%s302 + $0x38] sm:$0xff] %v334
        $region48: #{tpu_custom_call.1} parent=31 // pred_fallthru
          _
        %p343 = scmp.gt.s32.totalorder %s33, 0
        %p344 = scmp.lt.s32.totalorder %s33, 3
        %p345 = pnand %p343, %p344
        %p346 = pneg %p345
        // Predicated region
        $region49: #{tpu_custom_call.1} parent=31 // pred_check
          _
        $region50: #{tpu_custom_call.1} parent=31 // pred_check_branch
          %348 = sbr.rel (%p345) target = $region52
        $region51: #{tpu_custom_call.1} parent=31 // pred_region
          %v349 = vld [vmem:[%s302] sm:$0xff]
          %v350 = vld [vmem:[%s302 + $0x8] sm:$0xff]
          %v351 = vld [vmem:[%s302 + $0x10] sm:$0xff]
          %v352 = vld [vmem:[%s302 + $0x18] sm:$0xff]
          %v353 = vld [vmem:[%s302 + $0x20] sm:$0xff]
          %v354 = vld [vmem:[%s302 + $0x28] sm:$0xff]
          %v355 = vld [vmem:[%s302 + $0x30] sm:$0xff]
          %v356 = vld [vmem:[%s302 + $0x38] sm:$0xff]
          %v357 = vld [vmem:[%s252] sm:$0xff]
          %v358 = vld [vmem:[%s252 + $0x8] sm:$0xff]
          %v359 = vld [vmem:[%s252 + $0x10] sm:$0xff]
          %v360 = vld [vmem:[%s252 + $0x18] sm:$0xff]
          %v361 = vld [vmem:[%s252 + $0x20] sm:$0xff]
          %v362 = vld [vmem:[%s252 + $0x28] sm:$0xff]
          %v363 = vld [vmem:[%s252 + $0x30] sm:$0xff]
          %v364 = vld [vmem:[%s252 + $0x38] sm:$0xff]
          %v365 = vadd.f32 %v349, %v357
          %v366 = vadd.f32 %v350, %v358
          %v367 = vadd.f32 %v351, %v359
          %v368 = vadd.f32 %v352, %v360
          %v369 = vadd.f32 %v353, %v361
          %v370 = vadd.f32 %v354, %v362
          %v371 = vadd.f32 %v355, %v363
          %v372 = vadd.f32 %v356, %v364
          %373 = vst [vmem:[%s302] sm:$0xff] %v365
          %374 = vst [vmem:[%s302 + $0x8] sm:$0xff] %v366
          %375 = vst [vmem:[%s302 + $0x10] sm:$0xff] %v367
          %376 = vst [vmem:[%s302 + $0x18] sm:$0xff] %v368
          %377 = vst [vmem:[%s302 + $0x20] sm:$0xff] %v369
          %378 = vst [vmem:[%s302 + $0x28] sm:$0xff] %v370
          %379 = vst [vmem:[%s302 + $0x30] sm:$0xff] %v371
          %380 = vst [vmem:[%s302 + $0x38] sm:$0xff] %v372
        $region52: #{tpu_custom_call.1} parent=31 // pred_fallthru
          _
        %p381 = scmp.eq.s32.totalorder %s33, 3
        // Predicated region
        $region53: #{tpu_custom_call.1} parent=31 // pred_check
          %p382 = pneg %p381
        $region54: #{tpu_custom_call.1} parent=31 // pred_check_branch
          %384 = sbr.rel (%p382) target = $region56
        $region55: #{tpu_custom_call.1} parent=31 // pred_region
          %v385 = vld [vmem:[%s302] sm:$0xff]
          %v386 = vld [vmem:[%s302 + $0x8] sm:$0xff]
          %v387 = vld [vmem:[%s302 + $0x10] sm:$0xff]
          %v388 = vld [vmem:[%s302 + $0x18] sm:$0xff]
          %v389 = vld [vmem:[%s302 + $0x20] sm:$0xff]
          %v390 = vld [vmem:[%s302 + $0x28] sm:$0xff]
          %v391 = vld [vmem:[%s302 + $0x30] sm:$0xff]
          %v392 = vld [vmem:[%s302 + $0x38] sm:$0xff]
          %v393 = vld [vmem:[%s252] sm:$0xff]
          %v394 = vld [vmem:[%s252 + $0x8] sm:$0xff]
          %v395 = vld [vmem:[%s252 + $0x10] sm:$0xff]
          %v396 = vld [vmem:[%s252 + $0x18] sm:$0xff]
          %v397 = vld [vmem:[%s252 + $0x20] sm:$0xff]
          %v398 = vld [vmem:[%s252 + $0x28] sm:$0xff]
          %v399 = vld [vmem:[%s252 + $0x30] sm:$0xff]
          %v400 = vld [vmem:[%s252 + $0x38] sm:$0xff]
          %v401 = vadd.f32 %v385, %v393
          %v402 = vadd.f32 %v386, %v394
          %v403 = vadd.f32 %v387, %v395
          %v404 = vadd.f32 %v388, %v396
          %v405 = vadd.f32 %v389, %v397
          %v406 = vadd.f32 %v390, %v398
          %v407 = vadd.f32 %v391, %v399
          %v408 = vadd.f32 %v392, %v400
          %409 = vst [vmem:[%s302] sm:$0xff] %v401
          %410 = vst [vmem:[%s302 + $0x8] sm:$0xff] %v402
          %411 = vst [vmem:[%s302 + $0x10] sm:$0xff] %v403
          %412 = vst [vmem:[%s302 + $0x18] sm:$0xff] %v404
          %413 = vst [vmem:[%s302 + $0x20] sm:$0xff] %v405
          %414 = vst [vmem:[%s302 + $0x28] sm:$0xff] %v406
          %415 = vst [vmem:[%s302 + $0x30] sm:$0xff] %v407
          %416 = vst [vmem:[%s302 + $0x38] sm:$0xff] %v408
          %v417 = vmul.f32 %v401, %v401
          %v418 = vmul.f32 %v402, %v402
          %v419 = vmul.f32 %v403, %v403
          %v420 = vmul.f32 %v404, %v404
          %v421 = vmul.f32 %v405, %v405
          %v422 = vmul.f32 %v406, %v406
          %v423 = vmul.f32 %v407, %v407
          %v424 = vmul.f32 %v408, %v408
          %v425 = vadd.f32 %v417, %v418
          %426 = vadd.xlane.f32.xlu0 %v425
          %v427 = vpop.xlane.xlu0 %426
          %v428 = vadd.f32 %v419, %v420
          %429 = vadd.xlane.f32.xlu0 %v428
          %v430 = vpop.xlane.xlu0 %429
          %v431 = vadd.f32 %v421, %v422
          %432 = vadd.xlane.f32.xlu0 %v431
          %v433 = vpop.xlane.xlu0 %432
          %v434 = vadd.f32 %v423, %v424
          %435 = vadd.xlane.f32.xlu0 %v434
          %v436 = vpop.xlane.xlu0 %435
          %v437 = vrcp.pop 256.0
          %v438 = vmul.f32 256.0, %v437
          %v439 = vsub.f32 1.0, %v438
          %v440 = vmul.f32 %v437, %v439
          %v441 = vadd.f32 %v437, %v440
          %vm442 = vweird.f32 %v437
          %v443 = vsel %vm442, %v437, %v441
          %v444 = vmul.f32 %v427, %v443
          %v445 = vmul.f32 %v430, %v443
          %v446 = vmul.f32 %v433, %v443
          %v447 = vmul.f32 %v436, %v443
          %v448 = vadd.f32 %v444, 1e-06
          %v449 = vadd.f32 %v445, 1e-06
          %v450 = vadd.f32 %v446, 1e-06
          %v451 = vadd.f32 %v447, 1e-06
          %v452 = vrsqrt.pop %v448
          %v453 = vmul.f32 %v452, %v448
          %v454 = vmul.f32 %v453, %v452
          %v455 = vmul.f32 0.5, %v454
          %v456 = vsub.f32 1.5, %v455
          %v457 = vmul.f32 %v452, %v456
          %vm458 = vweird.f32 %v448
          %vm459 = vweird.f32 %v452
          %vm460 = vmor %vm458, %vm459
          %v461 = vsel %vm460, %v452, %v457
          %v462 = vrsqrt.pop %v449
          %v463 = vmul.f32 %v462, %v449
          %v464 = vmul.f32 %v463, %v462
          %v465 = vmul.f32 0.5, %v464
          %v466 = vsub.f32 1.5, %v465
          %v467 = vmul.f32 %v462, %v466
          %vm468 = vweird.f32 %v449
          %vm469 = vweird.f32 %v462
          %vm470 = vmor %vm468, %vm469
          %v471 = vsel %vm470, %v462, %v467
          %v472 = vrsqrt.pop %v450
          %v473 = vmul.f32 %v472, %v450
          %v474 = vmul.f32 %v473, %v472
          %v475 = vmul.f32 0.5, %v474
          %v476 = vsub.f32 1.5, %v475
          %v477 = vmul.f32 %v472, %v476
          %vm478 = vweird.f32 %v450
          %vm479 = vweird.f32 %v472
          %vm480 = vmor %vm478, %vm479
          %v481 = vsel %vm480, %v472, %v477
          %v482 = vrsqrt.pop %v451
          %v483 = vmul.f32 %v482, %v451
          %v484 = vmul.f32 %v483, %v482
          %v485 = vmul.f32 0.5, %v484
          %v486 = vsub.f32 1.5, %v485
          %v487 = vmul.f32 %v482, %v486
          %vm488 = vweird.f32 %v451
          %vm489 = vweird.f32 %v482
          %vm490 = vmor %vm488, %vm489
          %v491 = vsel %vm490, %v482, %v487
          %v492 = vld [vmem:[#allocation7] sm:$0x3]
          %v493 = vmul.f32 %v401, %v461
          %v494 = vmul.f32 %v402, %v461
          %v495 = vmul.f32 %v403, %v471
          %v496 = vmul.f32 %v404, %v471
          %v497 = vmul.f32 %v405, %v481
          %v498 = vmul.f32 %v406, %v481
          %v499 = vmul.f32 %v407, %v491
          %v500 = vmul.f32 %v408, %v491
          %v502 = vperm.slane %v492, 0
          %v503 = vperm.slane %v492, 1
          %v506 = vmul.f32 %v493, %v502
          %v507 = vmul.f32 %v494, %v503
          %v508 = vmul.f32 %v495, %v502
          %v509 = vmul.f32 %v496, %v503
          %v510 = vmul.f32 %v497, %v502
          %v511 = vmul.f32 %v498, %v503
          %v512 = vmul.f32 %v499, %v502
          %v513 = vmul.f32 %v500, %v503
          %514 = vst [vmem:[%s295] sm:$0xff] %v506
          %515 = vst [vmem:[%s295 + $0x8] sm:$0xff] %v507
          %516 = vst [vmem:[%s295 + $0x10] sm:$0xff] %v508
          %517 = vst [vmem:[%s295 + $0x18] sm:$0xff] %v509
          %518 = vst [vmem:[%s295 + $0x20] sm:$0xff] %v510
          %519 = vst [vmem:[%s295 + $0x28] sm:$0xff] %v511
          %520 = vst [vmem:[%s295 + $0x30] sm:$0xff] %v512
          %521 = vst [vmem:[%s295 + $0x38] sm:$0xff] %v513
        $region56: #{tpu_custom_call.1} parent=31 // pred_fallthru
          _
        %s522 = sand.u32 %s123, 1
        %s523 = scalar_lea.sflag [#allocation4], %s522
        %s524 = sand.u32 %s123, 1
        %s525 = smul.addr %s524, 64
        %s526 = scalar_lea.vmem [#allocation8], %s525
        %s527 = sand.u32 %s149, 1
        %s528 = scalar_lea.sflag [#allocation10], %s527
        %s529 = sand.u32 %s149, 1
        %s530 = smul.addr %s529, 64
        %s531 = scalar_lea.vmem [#allocation9], %s530
        // Predicated region
        $region57: #{tpu_custom_call.1} parent=31 // pred_check
          %p532 = pneg %p133
        $region58: #{tpu_custom_call.1} parent=31 // pred_check_branch
          %534 = sbr.rel (%p532) target = $region60
        $region59: #{tpu_custom_call.1} parent=31 // pred_region
          %s535 = smul.u32 4, %s32
          %537 = vsyncadd %s523, 0
          %s538 = smul.addr %s535, 2
          %s539 = smul.addr %s538, 8
          %s540 = scalar_lea.hbm %s3, %s539
          %s541 = sshll.u32 %s526, 4
          %s542 = int_to_ptr.vmem [resolvable:$true] %s541
          %s543 = sshll.u32 %s540, 4
          %s544 = int_to_ptr.hbm [resolvable:$true] %s543
          %549 = dma.vmem_to_hbm [thread:$0]  %s542, 1024, %s544, %s523, 256, 256, 16
        $region60: #{tpu_custom_call.1} parent=31 // pred_fallthru
          _
        // Predicated region
        $region61: #{tpu_custom_call.1} parent=31 // pred_check
          %p550 = pneg %p159
        $region62: #{tpu_custom_call.1} parent=31 // pred_check_branch
          %552 = sbr.rel (%p550) target = $region64
        $region63: #{tpu_custom_call.1} parent=31 // pred_region
          %s553 = smul.u32 4, %s32
          %555 = vsyncadd %s528, 0
          %s556 = smul.addr %s553, 2
          %s557 = smul.addr %s556, 8
          %s558 = scalar_lea.hbm %s4, %s557
          %s559 = sshll.u32 %s531, 4
          %s560 = int_to_ptr.vmem [resolvable:$true] %s559
          %s561 = sshll.u32 %s558, 4
          %s562 = int_to_ptr.hbm [resolvable:$true] %s561
          %567 = dma.vmem_to_hbm [thread:$0]  %s560, 1024, %s562, %s528, 256, 256, 16
        $region64: #{tpu_custom_call.1} parent=31 // pred_fallthru
          _
      $region32: #{tpu_custom_call.1} parent=5 // pred_fallthru
        _
      %p568 = scmp.le.s32.totalorder 2, %s23
      // Predicated region
      $region65: #{tpu_custom_call.1} parent=5 // pred_check
        %p569 = pneg %p568
      $region66: #{tpu_custom_call.1} parent=5 // pred_check_branch
        %571 = sbr.rel (%p569) target = $region68
      $region67: #{tpu_custom_call.1} parent=5 // pred_region
        %s572 = ssub.s32 %s23, 2
        // Predicated region
        $region69: #{tpu_custom_call.1} parent=67 // pred_check
          %p573 = pneg %p139
        $region70: #{tpu_custom_call.1} parent=67 // pred_check_branch
          %575 = sbr.rel (%p573) target = $region72
        $region71: #{tpu_custom_call.1} parent=67 // pred_region
          %s576 = sand.u32 %s124, 1
          %s577 = scalar_lea.sflag [#allocation4], %s576
          %s578 = sand.u32 %s124, 1
          %s579 = smul.addr %s578, 64
          %s580 = scalar_lea.vmem [#allocation8], %s579
          %582 = dma.done %s577, 1024
        $region72: #{tpu_custom_call.1} parent=67 // pred_fallthru
          _
        // Predicated region
        $region73: #{tpu_custom_call.1} parent=67 // pred_check
          %p583 = pneg %p165
        $region74: #{tpu_custom_call.1} parent=67 // pred_check_branch
          %585 = sbr.rel (%p583) target = $region76
        $region75: #{tpu_custom_call.1} parent=67 // pred_region
          %s586 = sand.u32 %s150, 1
          %s587 = scalar_lea.sflag [#allocation10], %s586
          %s588 = sand.u32 %s150, 1
          %s589 = smul.addr %s588, 64
          %s590 = scalar_lea.vmem [#allocation9], %s589
          %592 = dma.done %s587, 1024
        $region76: #{tpu_custom_call.1} parent=67 // pred_fallthru
          _
      $region68: #{tpu_custom_call.1} parent=5 // pred_fallthru
        _
    $region6: #{tpu_custom_call.1} parent=1 // loop_footer
      %s27 = sadd.s32 1, %s23
    $region7: #{tpu_custom_call.1} parent=1 // loop_footer_branch
      %22 = sbr.rel target = $region3
    $region8: #{tpu_custom_call.1} parent=1 // loop_exit
      _
    %593 = vsyncpa [#allocation3], 1
    %s594 = scalar_lea.sflag [#allocation3], 1
    %595 = vsyncpa %s594, 1
    %596 = vsyncpa [#allocation6], 1
    %s597 = scalar_lea.sflag [#allocation6], 1
    %598 = vsyncpa %s597, 1
    %599 = vsyncpa [#allocation4], 1
    %s600 = scalar_lea.sflag [#allocation4], 1
    %601 = vsyncpa %s600, 1
    %602 = vsyncpa [#allocation10], 1
    %s603 = scalar_lea.sflag [#allocation10], 1
    %604 = vsyncpa %s603, 1

</llo_original>
